<compile_context>
chip_gen: v7x
topology: tpu7x:2x2x1
jax: 0.10.0
libtpu: 0.0.40
codegen_flags: <defaults>
</compile_context>

<pallas_src>
import functools

import jax
import jax.numpy as jnp
from jax.experimental import pallas as pl
from jax.experimental.pallas import tpu as pltpu

# ----------------- config consistent with the module's shape math -------------------
B = 2            # batch
C = 4            # config.channel
IMG = 16         # img_size
PATCH = 4        # config.patch_size (n_layer = 0 -> factor 1 -> kernel == stride == PATCH)
HIDDEN = 32      # config.hidden_size
N_PATCHES = (IMG // PATCH) * (IMG // PATCH)   # 16


# ----------------------------------- kernel -----------------------------------------
def embeddings_kernel(patches_ref, xchw_ref, w_eff_ref, posb_ref,
                      map_wt_ref, map_b_ref, emb_ref, f2_ref, *, batch):
    # Patch embedding with Map folded into the conv weight: ONE MXU push
    #   (B*Np, 2C*p*p) @ (2C*p*p, D) -> (B*Np, D), bias+pos pre-tiled over batch.
    emb_ref[...] = (jnp.dot(patches_ref[...], w_eff_ref[...],
                            preferred_element_type=jnp.float32)
                    + posb_ref[...])

    # f2 = Map(cat(z, y)) in lane-dense [C, H*W] layout, per batch element:
    #   (C, 2C) @ (2C, H*W) = (4,8)@(8,256); static B == 2 loop (fully unrolled).
    for b in range(batch):
        f2_ref[b] = (jnp.dot(map_wt_ref[...], xchw_ref[b],
                             preferred_element_type=jnp.float32)
                     + map_b_ref[...])


# ------------------------------- pallas_call wrapper ---------------------------------
def _embeddings_call(patches, xchw, fused, batch, n_patches):
    kern = functools.partial(embeddings_kernel, batch=batch)
    vmem = pl.BlockSpec(memory_space=pltpu.MemorySpace.VMEM)   # full arrays, resident
    return pl.pallas_call(
        kern,
        out_shape=(jax.ShapeDtypeStruct((batch * n_patches, HIDDEN), jnp.float32),
                   jax.ShapeDtypeStruct((batch, C, IMG * IMG), jnp.float32)),
        in_specs=[vmem] * 6,
        out_specs=(vmem, vmem),
    )(patches, xchw, fused['w_eff'], fused['posb_tiled'],
      fused['map_wt'], fused['map_b_col'])


# --------------------------------- parameters ----------------------------------------
def init_params(key):
    k1, k2 = jax.random.split(key)

    def nrm(k, shape, scale=0.02):
        return scale * jax.random.normal(k, shape, dtype=jnp.float32)

    return {
        # Map: 1x1 conv 2C -> C stored as (2C, C) so pixel_vec @ map_w + map_b.
        # (A torch Conv2d weight (C, 2C, 1, 1) would need a transpose on load.)
        'map_w': nrm(k1, (2 * C, C)),
        'map_b': jnp.zeros((1, C), jnp.float32),
        # patch conv Conv2d(C, D, kernel=stride=PATCH) stored as (C*p*p, D)
        'patch_w': nrm(k2, (C * PATCH * PATCH, HIDDEN)),
        'patch_b': jnp.zeros((1, HIDDEN), jnp.float32),
        'pos': jnp.zeros((1, N_PATCHES, HIDDEN), jnp.float32),   # torch init: zeros
    }


def fuse_embedding_params(p, batch):
    """One-time algebraic fold of the Map 1x1 conv into the patch-embedding conv."""
    patch_w3 = p['patch_w'].reshape(C, PATCH * PATCH, HIDDEN)        # (c, ij, d)
    w_eff = jnp.einsum('xc,cpd->xpd', p['map_w'], patch_w3)          # (c2, ij, d)
    w_eff = w_eff.reshape(2 * C * PATCH * PATCH, HIDDEN)             # (2C*p*p, D)
    b_eff = p['patch_b'] + p['map_b'] @ patch_w3.sum(axis=1)         # (1, D)
    posb = p['pos'].reshape(N_PATCHES, HIDDEN) + b_eff               # (Np, D)
    posb_tiled = jnp.tile(posb, (batch, 1))                          # (B*Np, D)
    return {
        'w_eff': w_eff,
        'posb_tiled': posb_tiled,
        'map_wt': p['map_w'].T,                                      # (C, 2C)
        'map_b_col': p['map_b'].reshape(C, 1),                       # (C, 1)
    }


# --------------------------------- forward pass ---------------------------------------
def embeddings_forward(x, fused):
    # TODO(synk): Pre, Res, Res_ViT_Encoder, Map class bodies are not present in the
    # source file; Pre/Res/Res_ViT_Encoder are treated as identity feature extractors
    # (Res -> (y, y), Res_ViT_Encoder -> (x, x)) and Map as a 1x1 conv 2C -> C so the
    # concat / patch-embedding shape math stays consistent.
    y = x                                        # Pre(x)
    z, f1 = y, y                                 # Res(y)
    xc = jnp.concatenate([z, y], axis=1)         # [B, 2C, H, W]
    Bn, C2, H, W = xc.shape
    Hp, Wp = H // PATCH, W // PATCH

    # wrapper-side layout plumbing only: non-overlapping patch extraction
    patches = xc.reshape(Bn, C2, Hp, PATCH, Wp, PATCH)
    patches = patches.transpose(0, 2, 4, 1, 3, 5).reshape(
        Bn * Hp * Wp, C2 * PATCH * PATCH)        # (B*Np, 2C*p*p) = (32, 128)
    xchw = xc.reshape(Bn, C2, H * W)             # (B, 2C, H*W)   = (2, 8, 256)

    emb_flat, f2_flat = _embeddings_call(patches, xchw, fused, Bn, Hp * Wp)
    embeddings = emb_flat.reshape(Bn, Hp * Wp, HIDDEN)   # dropout (eval) -> identity
    f2 = f2_flat.reshape(Bn, C, H, W)
    return embeddings, z, f1, f2


# ------------------------------ pure-JAX reference ------------------------------------
def embeddings_reference(x, p):
    y = x
    z, f1 = y, y
    xc = jnp.concatenate([z, y], axis=1)
    Bn, _, H, W = xc.shape
    xm = jnp.einsum('bchw,cd->bdhw', xc, p['map_w']) + p['map_b'].reshape(1, C, 1, 1)
    xr, f2 = xm, xm
    Hp, Wp = H // PATCH, W // PATCH
    pt = xr.reshape(Bn, C, Hp, PATCH, Wp, PATCH).transpose(0, 2, 4, 1, 3, 5)
    pt = pt.reshape(Bn, Hp * Wp, C * PATCH * PATCH)
    emb = pt @ p['patch_w'] + p['patch_b'].reshape(1, 1, HIDDEN) + p['pos']
    return emb, z, f1, f2


if __name__ == "__main__":
    key = jax.random.PRNGKey(0)
    pk, xk = jax.random.split(key)
    params = init_params(pk)
    fused = fuse_embedding_params(params, B)
    x = jax.random.normal(xk, (B, C, IMG, IMG), dtype=jnp.float32)

    fwd = jax.jit(embeddings_forward)
    embeddings, z, f1, f2 = fwd(x, fused)
    jax.block_until_ready(embeddings)

    assert embeddings.shape == (B, N_PATCHES, HIDDEN)
    assert z.shape == (B, C, IMG, IMG)
    assert f1.shape == (B, C, IMG, IMG)
    assert f2.shape == (B, C, IMG, IMG)

    # check the fused/folded kernel against the unfolded pure-JAX module forward
    ref_emb, _, _, ref_f2 = embeddings_reference(x, params)
    assert jnp.allclose(embeddings, ref_emb, atol=1e-4, rtol=1e-4)
    assert jnp.allclose(f2, ref_f2, atol=1e-4, rtol=1e-4)

    print("KERNEL_OK")
</pallas_src>

<mosaic_0001>
module attributes {stable_mosaic.version = 11 : i64} {
  func.func @embeddings_kernel(%arg0: memref<32x128xf32, #tpu.memory_space<vmem>>, %arg1: memref<2x8x256xf32, #tpu.memory_space<vmem>>, %arg2: memref<128x32xf32, #tpu.memory_space<vmem>>, %arg3: memref<32x32xf32, #tpu.memory_space<vmem>>, %arg4: memref<4x8xf32, #tpu.memory_space<vmem>>, %arg5: memref<4x1xf32, #tpu.memory_space<vmem>>, %arg6: memref<32x32xf32, #tpu.memory_space<vmem>>, %arg7: memref<2x4x256xf32, #tpu.memory_space<vmem>>) attributes {dimension_semantics = [], scalar_prefetch = 0 : i64, scratch_operands = 0 : i64, tpu.core_type = #tpu.core_type<tc>} {
    %c0 = arith.constant 0 : index
    %c0_0 = arith.constant 0 : index
    %0 = vector.load %arg0[%c0, %c0_0] : memref<32x128xf32, #tpu.memory_space<vmem>>, vector<32x128xf32>
    %c0_1 = arith.constant 0 : index
    %c0_2 = arith.constant 0 : index
    %1 = vector.load %arg2[%c0_1, %c0_2] : memref<128x32xf32, #tpu.memory_space<vmem>>, vector<128x32xf32>
    %cst = arith.constant dense<0.000000e+00> : vector<32x32xf32>
    %2 = tpu.matmul %0, %1, %cst {dimension_numbers = #tpu.dot_dimension_numbers<[1], [0], [0], [1], [0, 0, 1, 1], [], []>} : vector<32x128xf32>, vector<128x32xf32>, vector<32x32xf32> -> vector<32x32xf32>
    %c0_3 = arith.constant 0 : index
    %c0_4 = arith.constant 0 : index
    %3 = vector.load %arg3[%c0_3, %c0_4] : memref<32x32xf32, #tpu.memory_space<vmem>>, vector<32x32xf32>
    %4 = arith.addf %2, %3 : vector<32x32xf32>
    %c0_5 = arith.constant 0 : index
    %c0_6 = arith.constant 0 : index
    %5 = vector.load %arg6[%c0_5, %c0_6] : memref<32x32xf32, #tpu.memory_space<vmem>>, vector<32x32xf32>
    tpu.vector_store %arg6[%c0_5, %c0_6], %4 {strides = array<i32>} : memref<32x32xf32, #tpu.memory_space<vmem>>, vector<32x32xf32>,
    %c0_7 = arith.constant 0 : index
    %c0_8 = arith.constant 0 : index
    %6 = vector.load %arg4[%c0_7, %c0_8] : memref<4x8xf32, #tpu.memory_space<vmem>>, vector<4x8xf32>
    %c0_9 = arith.constant 0 : index
    %c0_10 = arith.constant 0 : index
    %c0_11 = arith.constant 0 : index
    %7 = vector.load %arg1[%c0_9, %c0_10, %c0_11] : memref<2x8x256xf32, #tpu.memory_space<vmem>>, vector<1x8x256xf32>
    %8 = vector.shape_cast %7 : vector<1x8x256xf32> to vector<8x256xf32>
    %cst_12 = arith.constant dense<0.000000e+00> : vector<4x256xf32>
    %9 = tpu.matmul %6, %8, %cst_12 {dimension_numbers = #tpu.dot_dimension_numbers<[1], [0], [0], [1], [0, 0, 1, 1], [], []>} : vector<4x8xf32>, vector<8x256xf32>, vector<4x256xf32> -> vector<4x256xf32>
    %c0_13 = arith.constant 0 : index
    %c0_14 = arith.constant 0 : index
    %10 = vector.load %arg5[%c0_13, %c0_14] : memref<4x1xf32, #tpu.memory_space<vmem>>, vector<4x1xf32>
    %11 = vector.broadcast %10 : vector<4x1xf32> to vector<4x256xf32>
    %12 = arith.addf %9, %11 : vector<4x256xf32>
    %c0_15 = arith.constant 0 : index
    %c0_16 = arith.constant 0 : index
    %c0_17 = arith.constant 0 : index
    %13 = vector.load %arg7[%c0_15, %c0_16, %c0_17] : memref<2x4x256xf32, #tpu.memory_space<vmem>>, vector<1x4x256xf32>
    %14 = vector.shape_cast %13 : vector<1x4x256xf32> to vector<4x256xf32>
    %15 = vector.shape_cast %12 : vector<4x256xf32> to vector<1x4x256xf32>
    tpu.vector_store %arg7[%c0_15, %c0_16, %c0_17], %15 {strides = array<i32>} : memref<2x4x256xf32, #tpu.memory_space<vmem>>, vector<1x4x256xf32>,
    %c0_18 = arith.constant 0 : index
    %c0_19 = arith.constant 0 : index
    %16 = vector.load %arg4[%c0_18, %c0_19] : memref<4x8xf32, #tpu.memory_space<vmem>>, vector<4x8xf32>
    %c1 = arith.constant 1 : index
    %c0_20 = arith.constant 0 : index
    %c0_21 = arith.constant 0 : index
    %17 = vector.load %arg1[%c1, %c0_20, %c0_21] : memref<2x8x256xf32, #tpu.memory_space<vmem>>, vector<1x8x256xf32>
    %18 = vector.shape_cast %17 : vector<1x8x256xf32> to vector<8x256xf32>
    %cst_22 = arith.constant dense<0.000000e+00> : vector<4x256xf32>
    %19 = tpu.matmul %16, %18, %cst_22 {dimension_numbers = #tpu.dot_dimension_numbers<[1], [0], [0], [1], [0, 0, 1, 1], [], []>} : vector<4x8xf32>, vector<8x256xf32>, vector<4x256xf32> -> vector<4x256xf32>
    %c0_23 = arith.constant 0 : index
    %c0_24 = arith.constant 0 : index
    %20 = vector.load %arg5[%c0_23, %c0_24] : memref<4x1xf32, #tpu.memory_space<vmem>>, vector<4x1xf32>
    %21 = vector.broadcast %20 : vector<4x1xf32> to vector<4x256xf32>
    %22 = arith.addf %19, %21 : vector<4x256xf32>
    %c1_25 = arith.constant 1 : index
    %c0_26 = arith.constant 0 : index
    %c0_27 = arith.constant 0 : index
    %23 = vector.load %arg7[%c1_25, %c0_26, %c0_27] : memref<2x4x256xf32, #tpu.memory_space<vmem>>, vector<1x4x256xf32>
    %24 = vector.shape_cast %23 : vector<1x4x256xf32> to vector<4x256xf32>
    %25 = vector.shape_cast %22 : vector<4x256xf32> to vector<1x4x256xf32>
    tpu.vector_store %arg7[%c1_25, %c0_26, %c0_27], %25 {strides = array<i32>} : memref<2x4x256xf32, #tpu.memory_space<vmem>>, vector<1x4x256xf32>,
    return
  }
}

</mosaic_0001>

<llo_original>
// kernel: embeddings_forward.1
$region0: #{embeddings_forward.1}
  #allocation0 [shape = 'u32[]', space=smem, size = 0x4, offset = 0x4, fixed_abs, tag = 'smem constant byte address 0x4 - core index']
  #allocation1 [shape = 'u32[144,128]{1,0:T(1,128)}', space=vmem, size = 0x12000, scoped, tag = 'internal scratch']
  %s0 = inlined_call_operand.vmem [shape: f32[32,128], index: 0, kind: input, shape index: {}]
  %s1 = inlined_call_operand.vmem [shape: f32[2,8,256], index: 1, kind: input, shape index: {}]
  %s2 = inlined_call_operand.vmem [shape: f32[128,32], index: 2, kind: input, shape index: {}]
  %s3 = inlined_call_operand.vmem [shape: f32[32,32], index: 3, kind: input, shape index: {}]
  %s4 = inlined_call_operand.vmem [shape: f32[4,8], index: 4, kind: input, shape index: {}]
  %s5 = inlined_call_operand.vmem [shape: f32[4,1], index: 5, kind: input, shape index: {}]
  %s6 = inlined_call_operand.hbm [shape: f32[32,32], index: 6, kind: output, shape index: {0}]
  %s7 = inlined_call_operand.vmem [shape: f32[2,4,256], index: 7, kind: output, shape index: {1}]
  %8 = xla_tuple %s6, %s7
  %s9 = sld [smem:[#allocation0]]
  $region42: #{embeddings_forward.1} parent=0
    _
  %s11 = ssub.s32 1, %s9
  %s12 = scalar_select 0, %s11, %s9
  $region1: #{embeddings_forward.1} parent=0
    #allocation2 [shape = 'u8[16384]{0}', space=vmem, size = 0x4000, scoped, tag = 'output window, operand 0, single buffered']
    #allocation3 [shape = 's32[1]{0}', space=sflag, size = 0x4, scoped, tag = 'scoped memory for embeddings_forward.1']
    %13 = vsyncpa [#allocation3], 0
    // Predicated region
    $region2: #{embeddings_forward.1} parent=1 // pred_check
      _
    $region3: #{embeddings_forward.1} parent=1 // pred_check_branch
      %15 = sbr.rel (0) target = $region5
    $region4: #{embeddings_forward.1} parent=1 // pred_region
      _
    $region5: #{embeddings_forward.1} parent=1 // pred_fallthru
      _
    // Predicated region
    $region6: #{embeddings_forward.1} parent=1 // pred_check
      _
    $region7: #{embeddings_forward.1} parent=1 // pred_check_branch
      %17 = sbr.rel (0) target = $region9
    $region8: #{embeddings_forward.1} parent=1 // pred_region
      _
    $region9: #{embeddings_forward.1} parent=1 // pred_fallthru
      _
    // Predicated region
    $region10: #{embeddings_forward.1} parent=1 // pred_check
      _
    $region11: #{embeddings_forward.1} parent=1 // pred_check_branch
      %19 = sbr.rel (0) target = $region13
    $region12: #{embeddings_forward.1} parent=1 // pred_region
      _
    $region13: #{embeddings_forward.1} parent=1 // pred_fallthru
      _
    // Predicated region
    $region14: #{embeddings_forward.1} parent=1 // pred_check
      _
    $region15: #{embeddings_forward.1} parent=1 // pred_check_branch
      %21 = sbr.rel (0) target = $region17
    $region16: #{embeddings_forward.1} parent=1 // pred_region
      _
    $region17: #{embeddings_forward.1} parent=1 // pred_fallthru
      _
    // Predicated region
    $region18: #{embeddings_forward.1} parent=1 // pred_check
      _
    $region19: #{embeddings_forward.1} parent=1 // pred_check_branch
      %23 = sbr.rel (0) target = $region21
    $region20: #{embeddings_forward.1} parent=1 // pred_region
      _
    $region21: #{embeddings_forward.1} parent=1 // pred_fallthru
      _
    // Predicated region
    $region22: #{embeddings_forward.1} parent=1 // pred_check
      _
    $region23: #{embeddings_forward.1} parent=1 // pred_check_branch
      %25 = sbr.rel (0) target = $region25
    $region24: #{embeddings_forward.1} parent=1 // pred_region
      _
    $region25: #{embeddings_forward.1} parent=1 // pred_fallthru
      _
    %v26 = vld [vmem:[%s0] sm:$0xff]
    %v27 = vld [vmem:[%s0 + $0x8] sm:$0xff]
    %v28 = vld [vmem:[%s0 + $0x10] sm:$0xff]
    %v29 = vld [vmem:[%s0 + $0x18] sm:$0xff]
    %v30 = vld [vmem:[%s2] sm:$0xff]
    %v31 = vld [vmem:[%s2 + $0x8] sm:$0xff]
    %v32 = vld [vmem:[%s2 + $0x10] sm:$0xff]
    %v33 = vld [vmem:[%s2 + $0x18] sm:$0xff]
    %v34 = vld [vmem:[%s2 + $0x20] sm:$0xff]
    %v35 = vld [vmem:[%s2 + $0x28] sm:$0xff]
    %v36 = vld [vmem:[%s2 + $0x30] sm:$0xff]
    %v37 = vld [vmem:[%s2 + $0x38] sm:$0xff]
    %v38 = vld [vmem:[%s2 + $0x40] sm:$0xff]
    %v39 = vld [vmem:[%s2 + $0x48] sm:$0xff]
    %v40 = vld [vmem:[%s2 + $0x50] sm:$0xff]
    %v41 = vld [vmem:[%s2 + $0x58] sm:$0xff]
    %v42 = vld [vmem:[%s2 + $0x60] sm:$0xff]
    %v43 = vld [vmem:[%s2 + $0x68] sm:$0xff]
    %v44 = vld [vmem:[%s2 + $0x70] sm:$0xff]
    %v45 = vld [vmem:[%s2 + $0x78] sm:$0xff]
    %v46 = vld [vmem:[%s3] sm:$0xff]
    %v47 = vld [vmem:[%s3 + $0x8] sm:$0xff]
    %v48 = vld [vmem:[%s3 + $0x10] sm:$0xff]
    %v49 = vld [vmem:[%s3 + $0x18] sm:$0xff]
    %50 = vmatprep.subr.mxu0 0.0
    %51 = vmatpush1.msra.mxu0 %v30
    %52 = vmatprep.subr.mxu0 0.0
    %53 = vmatpush1.msra.mxu0 %v31
    %54 = vmatprep.subr.mxu0 0.0
    %55 = vmatpush1.msra.mxu0 %v32
    %56 = vmatprep.subr.mxu0 0.0
    %57 = vmatpush1.msra.mxu0 %v33
    %58 = vmatprep.subr.mxu0 0.0
    %59 = vmatpush1.msra.mxu0 %v34
    %60 = vmatprep.subr.mxu0 0.0
    %61 = vmatpush1.msra.mxu0 %v35
    %62 = vmatprep.subr.mxu0 0.0
    %63 = vmatpush1.msra.mxu0 %v36
    %64 = vmatprep.subr.mxu0 0.0
    %65 = vmatpush1.msra.mxu0 %v37
    %66 = vmatprep.subr.mxu0 0.0
    %67 = vmatpush1.msra.mxu0 %v38
    %68 = vmatprep.subr.mxu0 0.0
    %69 = vmatpush1.msra.mxu0 %v39
    %70 = vmatprep.subr.mxu0 0.0
    %71 = vmatpush1.msra.mxu0 %v40
    %72 = vmatprep.subr.mxu0 0.0
    %73 = vmatpush1.msra.mxu0 %v41
    %74 = vmatprep.subr.mxu0 0.0
    %75 = vmatpush1.msra.mxu0 %v42
    %76 = vmatprep.subr.mxu0 0.0
    %77 = vmatpush1.msra.mxu0 %v43
    %78 = vmatprep.subr.mxu0 0.0
    %79 = vmatpush1.msra.mxu0 %v44
    %80 = vmatprep.subr.mxu0 0.0
    %81 = vmatpush1.msra.mxu0 %v45
    %82 = vmatprep.subr.mxu0 0.0
    %83 = vmatpush1.msra.mxu0 0.0
    %84 = vmatprep.subr.mxu0 0.0
    %85 = vmatpush1.msra.mxu0 0.0
    %86 = vmatprep.subr.mxu0 0.0
    %87 = vmatpush1.msra.mxu0 0.0
    %88 = vmatprep.subr.mxu0 0.0
    %89 = vmatpush1.msra.mxu0 0.0
    %90 = vmatprep.subr.mxu0 0.0
    %91 = vmatpush1.msra.mxu0 0.0
    %92 = vmatprep.subr.mxu0 0.0
    %93 = vmatpush1.msra.mxu0 0.0
    %94 = vmatprep.subr.mxu0 0.0
    %95 = vmatpush1.msra.mxu0 0.0
    %96 = vmatprep.subr.mxu0 0.0
    %97 = vmatpush1.msra.mxu0 0.0
    %98 = vmatprep.subr.mxu0 0.0
    %99 = vmatpush1.msra.mxu0 0.0
    %100 = vmatprep.subr.mxu0 0.0
    %101 = vmatpush1.msra.mxu0 0.0
    %102 = vmatprep.subr.mxu0 0.0
    %103 = vmatpush1.msra.mxu0 0.0
    %104 = vmatprep.subr.mxu0 0.0
    %105 = vmatpush1.msra.mxu0 0.0
    %106 = vmatprep.subr.mxu0 0.0
    %107 = vmatpush1.msra.mxu0 0.0
    %108 = vmatprep.subr.mxu0 0.0
    %109 = vmatpush1.msra.mxu0 0.0
    %110 = vmatprep.subr.mxu0 0.0
    %111 = vmatpush1.msra.mxu0 0.0
    %112 = vmatprep.subr.mxu0 0.0
    %113 = vmatpush1.msra.mxu0 0.0
    %114 = vmatprep.mubr.f32.mxu0 0.0
    %115 = vmatmul.mubr.f32.gmra.mrb[0].mxu0 %v26
    %v116 = vpop.f32.mrb[0].mxu0
    %v117 = vadd.f32 %v46, %v116
    %v118 = vpop.f32.mrb[0].mxu0
    %119 = vmatprep.mubr.f32.mxu0 0.0
    %120 = vmatmul.mubr.f32.gmra.mrb[0].mxu0 %v27
    %v121 = vpop.f32.mrb[0].mxu0
    %v122 = vadd.f32 %v47, %v121
    %v123 = vpop.f32.mrb[0].mxu0
    %124 = vmatprep.mubr.f32.mxu0 0.0
    %125 = vmatmul.mubr.f32.gmra.mrb[0].mxu0 %v28
    %v126 = vpop.f32.mrb[0].mxu0
    %v127 = vadd.f32 %v48, %v126
    %v128 = vpop.f32.mrb[0].mxu0
    %129 = vmatprep.mubr.f32.mxu0 0.0
    %130 = vmatmul.mubr.f32.gmra.mrb[0].mxu0 %v29
    %v131 = vpop.f32.mrb[0].mxu0
    %v132 = vadd.f32 %v49, %v131
    %v133 = vpop.f32.mrb[0].mxu0
    %134 = vdwg.mxu0
    %vm135 = vcmask 261120
    %136 = vst.msk [vmem:[#allocation2] sm:$0xff] %vm135, %v117
    %137 = vst.msk [vmem:[#allocation2 + $0x8] sm:$0xff] %vm135, %v122
    %138 = vst.msk [vmem:[#allocation2 + $0x10] sm:$0xff] %vm135, %v127
    %139 = vst.msk [vmem:[#allocation2 + $0x18] sm:$0xff] %vm135, %v132
    %v140 = vld [vmem:[%s4] sm:$0xf]
    %v141 = vld [vmem:[%s1] sm:$0xff]
    %v142 = vld [vmem:[%s1 + $0x8] sm:$0xff]
    %v143 = vld [vmem:[%s5] sm:$0xf]
    %145 = vset.pattern.permute.xlu0 0
    %146 = vperm.xlu0 %145, %v143
    %v147 = vpop.permute.xlu0 %146
    %vm149 = vcmask 64512
    %v151 = vsel %vm149, %v140, 0
    %153 = vmatprep.subr.mxu0 %v142
    %154 = vmatpush1.msra.mxu0 %v141
    %155 = vmatprep.subr.mxu0 0.0
    %156 = vmatpush1.msra.mxu0 0.0
    %157 = vmatprep.subr.mxu0 0.0
    %158 = vmatpush1.msra.mxu0 0.0
    %159 = vmatprep.subr.mxu0 0.0
    %160 = vmatpush1.msra.mxu0 0.0
    %161 = vmatprep.subr.mxu0 0.0
    %162 = vmatpush1.msra.mxu0 0.0
    %163 = vmatprep.subr.mxu0 0.0
    %164 = vmatpush1.msra.mxu0 0.0
    %165 = vmatprep.subr.mxu0 0.0
    %166 = vmatpush1.msra.mxu0 0.0
    %167 = vmatprep.subr.mxu0 0.0
    %168 = vmatpush1.msra.mxu0 0.0
    %169 = vmatprep.subr.mxu0 0.0
    %170 = vmatpush1.msra.mxu0 0.0
    %171 = vmatprep.subr.mxu0 0.0
    %172 = vmatpush1.msra.mxu0 0.0
    %173 = vmatprep.subr.mxu0 0.0
    %174 = vmatpush1.msra.mxu0 0.0
    %175 = vmatprep.subr.mxu0 0.0
    %176 = vmatpush1.msra.mxu0 0.0
    %177 = vmatprep.subr.mxu0 0.0
    %178 = vmatpush1.msra.mxu0 0.0
    %179 = vmatprep.subr.mxu0 0.0
    %180 = vmatpush1.msra.mxu0 0.0
    %181 = vmatprep.subr.mxu0 0.0
    %182 = vmatpush1.msra.mxu0 0.0
    %183 = vmatprep.subr.mxu0 0.0
    %184 = vmatpush1.msra.mxu0 0.0
    %185 = vmatprep.subr.mxu0 0.0
    %186 = vmatpush1.msra.mxu0 0.0
    %187 = vmatprep.subr.mxu0 0.0
    %188 = vmatpush1.msra.mxu0 0.0
    %189 = vmatprep.subr.mxu0 0.0
    %190 = vmatpush1.msra.mxu0 0.0
    %191 = vmatprep.subr.mxu0 0.0
    %192 = vmatpush1.msra.mxu0 0.0
    %193 = vmatprep.subr.mxu0 0.0
    %194 = vmatpush1.msra.mxu0 0.0
    %195 = vmatprep.subr.mxu0 0.0
    %196 = vmatpush1.msra.mxu0 0.0
    %197 = vmatprep.subr.mxu0 0.0
    %198 = vmatpush1.msra.mxu0 0.0
    %199 = vmatprep.subr.mxu0 0.0
    %200 = vmatpush1.msra.mxu0 0.0
    %201 = vmatprep.subr.mxu0 0.0
    %202 = vmatpush1.msra.mxu0 0.0
    %203 = vmatprep.subr.mxu0 0.0
    %204 = vmatpush1.msra.mxu0 0.0
    %205 = vmatprep.subr.mxu0 0.0
    %206 = vmatpush1.msra.mxu0 0.0
    %207 = vmatprep.subr.mxu0 0.0
    %208 = vmatpush1.msra.mxu0 0.0
    %209 = vmatprep.subr.mxu0 0.0
    %210 = vmatpush1.msra.mxu0 0.0
    %211 = vmatprep.subr.mxu0 0.0
    %212 = vmatpush1.msra.mxu0 0.0
    %213 = vmatprep.subr.mxu0 0.0
    %214 = vmatpush1.msra.mxu0 0.0
    %215 = vmatprep.subr.mxu0 0.0
    %216 = vmatpush1.msra.mxu0 0.0
    %217 = vmatprep.mubr.f32.mxu0 0.0
    %218 = vmatmul.mubr.f32.gmra.mrb[0].mxu0 %v151
    %v219 = vpop.f32.mrb[0].mxu0
    %v220 = vadd.f32 %v147, %v219
    %v221 = vpop.f32.mrb[0].mxu0
    %v222 = vadd.f32 %v147, %v221
    %223 = vdwg.mxu0
    %v226 = vcombine.low %v220, %v222
    %228 = vst [vmem:[%s7] sm:$0xff] %v226
    %v229 = vld [vmem:[%s4] sm:$0xf]
    %s230 = scalar_lea.vmem %s1, 16
    %v231 = vld [vmem:[%s230] sm:$0xff]
    %v232 = vld [vmem:[%s230 + $0x8] sm:$0xff]
    %v233 = vld [vmem:[%s5] sm:$0xf]
    %235 = vset.pattern.permute.xlu0 0
    %236 = vperm.xlu0 %235, %v233
    %v237 = vpop.permute.xlu0 %236
    %v240 = vsel %vm149, %v229, 0
    %242 = vmatprep.subr.mxu0 %v232
    %243 = vmatpush1.msra.mxu0 %v231
    %244 = vmatprep.subr.mxu0 0.0
    %245 = vmatpush1.msra.mxu0 0.0
    %246 = vmatprep.subr.mxu0 0.0
    %247 = vmatpush1.msra.mxu0 0.0
    %248 = vmatprep.subr.mxu0 0.0
    %249 = vmatpush1.msra.mxu0 0.0
    %250 = vmatprep.subr.mxu0 0.0
    %251 = vmatpush1.msra.mxu0 0.0
    %252 = vmatprep.subr.mxu0 0.0
    %253 = vmatpush1.msra.mxu0 0.0
    %254 = vmatprep.subr.mxu0 0.0
    %255 = vmatpush1.msra.mxu0 0.0
    %256 = vmatprep.subr.mxu0 0.0
    %257 = vmatpush1.msra.mxu0 0.0
    %258 = vmatprep.subr.mxu0 0.0
    %259 = vmatpush1.msra.mxu0 0.0
    %260 = vmatprep.subr.mxu0 0.0
    %261 = vmatpush1.msra.mxu0 0.0
    %262 = vmatprep.subr.mxu0 0.0
    %263 = vmatpush1.msra.mxu0 0.0
    %264 = vmatprep.subr.mxu0 0.0
    %265 = vmatpush1.msra.mxu0 0.0
    %266 = vmatprep.subr.mxu0 0.0
    %267 = vmatpush1.msra.mxu0 0.0
    %268 = vmatprep.subr.mxu0 0.0
    %269 = vmatpush1.msra.mxu0 0.0
    %270 = vmatprep.subr.mxu0 0.0
    %271 = vmatpush1.msra.mxu0 0.0
    %272 = vmatprep.subr.mxu0 0.0
    %273 = vmatpush1.msra.mxu0 0.0
    %274 = vmatprep.subr.mxu0 0.0
    %275 = vmatpush1.msra.mxu0 0.0
    %276 = vmatprep.subr.mxu0 0.0
    %277 = vmatpush1.msra.mxu0 0.0
    %278 = vmatprep.subr.mxu0 0.0
    %279 = vmatpush1.msra.mxu0 0.0
    %280 = vmatprep.subr.mxu0 0.0
    %281 = vmatpush1.msra.mxu0 0.0
    %282 = vmatprep.subr.mxu0 0.0
    %283 = vmatpush1.msra.mxu0 0.0
    %284 = vmatprep.subr.mxu0 0.0
    %285 = vmatpush1.msra.mxu0 0.0
    %286 = vmatprep.subr.mxu0 0.0
    %287 = vmatpush1.msra.mxu0 0.0
    %288 = vmatprep.subr.mxu0 0.0
    %289 = vmatpush1.msra.mxu0 0.0
    %290 = vmatprep.subr.mxu0 0.0
    %291 = vmatpush1.msra.mxu0 0.0
    %292 = vmatprep.subr.mxu0 0.0
    %293 = vmatpush1.msra.mxu0 0.0
    %294 = vmatprep.subr.mxu0 0.0
    %295 = vmatpush1.msra.mxu0 0.0
    %296 = vmatprep.subr.mxu0 0.0
    %297 = vmatpush1.msra.mxu0 0.0
    %298 = vmatprep.subr.mxu0 0.0
    %299 = vmatpush1.msra.mxu0 0.0
    %300 = vmatprep.subr.mxu0 0.0
    %301 = vmatpush1.msra.mxu0 0.0
    %302 = vmatprep.subr.mxu0 0.0
    %303 = vmatpush1.msra.mxu0 0.0
    %304 = vmatprep.subr.mxu0 0.0
    %305 = vmatpush1.msra.mxu0 0.0
    %306 = vmatprep.mubr.f32.mxu0 0.0
    %307 = vmatmul.mubr.f32.gmra.mrb[0].mxu0 %v240
    %v308 = vpop.f32.mrb[0].mxu0
    %v309 = vadd.f32 %v237, %v308
    %v310 = vpop.f32.mrb[0].mxu0
    %v311 = vadd.f32 %v237, %v310
    %312 = vdwg.mxu0
    %v315 = vcombine.low %v309, %v311
    %s317 = scalar_lea.vmem %s7, 8
    %318 = vst [vmem:[%s317] sm:$0xff] %v315
    // Predicated region
    $region26: #{embeddings_forward.1} parent=1 // pred_check
      _
    $region27: #{embeddings_forward.1} parent=1 // pred_check_branch
      %320 = sbr.rel (0) target = $region29
    $region28: #{embeddings_forward.1} parent=1 // pred_region
      %s322 = ssub.s32 512, 512
      %323 = vsyncadd [#allocation3], %s322
      %s324 = sshll.u32 [#allocation2], 4
      %s325 = int_to_ptr.vmem [resolvable:$true] %s324
      %330 = dma.vmem_to_hbm [thread:$0]  %s325, 512, %s6, [#allocation3], 128, 128, 8
    $region29: #{embeddings_forward.1} parent=1 // pred_fallthru
      _
    // Predicated region
    $region30: #{embeddings_forward.1} parent=1 // pred_check
      _
    $region31: #{embeddings_forward.1} parent=1 // pred_check_branch
      %332 = sbr.rel (0) target = $region33
    $region32: #{embeddings_forward.1} parent=1 // pred_region
      _
    $region33: #{embeddings_forward.1} parent=1 // pred_fallthru
      _
    // Predicated region
    $region34: #{embeddings_forward.1} parent=1 // pred_check
      _
    $region35: #{embeddings_forward.1} parent=1 // pred_check_branch
      %334 = sbr.rel (0) target = $region37
    $region36: #{embeddings_forward.1} parent=1 // pred_region
      %335 = dma.done [#allocation3], 512
    $region37: #{embeddings_forward.1} parent=1 // pred_fallthru
      _
    // Predicated region
    $region38: #{embeddings_forward.1} parent=1 // pred_check
      _
    $region39: #{embeddings_forward.1} parent=1 // pred_check_branch
      %337 = sbr.rel (0) target = $region41
    $region40: #{embeddings_forward.1} parent=1 // pred_region
      _
    $region41: #{embeddings_forward.1} parent=1 // pred_fallthru
      _
    %338 = vsyncpa [#allocation3], 1

</llo_original>
